<compile_context>
chip_gen: v6e
topology: v6e:2x2x1
jax: 0.10.0
libtpu: 0.0.40
codegen_flags: <defaults>
</compile_context>

<pallas_src>
import functools

import jax
import jax.numpy as jnp
from jax.experimental import pallas as pl
from jax.experimental.pallas import tpu as pltpu


LEAKY_SLOPE = 0.01   # nn.LeakyReLU default
BN_EPS = 1e-5        # nn.BatchNorm1d default


def _leaky_relu(x):
    return jnp.where(x >= 0, x, LEAKY_SLOPE * x)


def _round_up(n, m):
    return ((n + m - 1) // m) * m


# --------------------------------------------------------------------------
# Kernel
# --------------------------------------------------------------------------
def category_decoder_kernel(w_ref, vec_ref, z_ref, tgt_ref, out_ref,
                            *, B, F, Kz, K1, K2, Kh, v_bb, v_rx, use_bf16):
    f32 = jnp.float32
    inv_b = f32(1.0 / B)
    mm_dtype = jnp.bfloat16 if use_bf16 else f32

    # One unmasked (8, F) vreg load for all biases / BN vectors.
    vec = vec_ref[...]
    b_zh, b1, g1, be1 = vec[0:1], vec[1:2], vec[2:3], vec[3:4]
    b2, g2, be2, b_hd = vec[4:5], vec[5:6], vec[6:7], vec[7:8]

    # Static row offsets into the weight slab (rows padded to 8/16, not 128).
    o0 = 0
    o1 = o0 + Kz    # end w_zh
    o2 = o1 + K1    # end w1
    o3 = o2 + K2    # end w2
    o4 = o3 + Kh    # end fused head weight

    def mm(a, lo, hi):
        # Load the weight tile right at its use site (short live range) and
        # run the MXU matmul with the layer's real (padded-to-8) K.
        w = w_ref[lo:hi, :]
        return jnp.dot(a.astype(mm_dtype), w, preferred_element_type=f32)

    def batchnorm_train(x, gamma, beta):
        # Two-pass batch stats via sublane (XLU) reductions: B=8 rows is one
        # sublane group; two-pass avoids E[x^2]-mean^2 cancellation and keeps
        # the MXU result path free between the layer matmuls.
        mean = jnp.sum(x, axis=0, keepdims=True) * inv_b
        d = x - mean
        var = jnp.sum(d * d, axis=0, keepdims=True) * inv_b     # biased var
        return d * jax.lax.rsqrt(var + BN_EPS) * gamma + beta

    # ---- forward ----------------------------------------------------------
    h = mm(z_ref[...], o0, o1) + b_zh                                # z_to_h
    x = batchnorm_train(_leaky_relu(mm(h[:, :K1], o1, o2) + b1), g1, be1)
    y = batchnorm_train(_leaky_relu(mm(x[:, :K2], o2, o3) + b2), g2, be2)
    logits = mm(y[:, :Kh], o3, o4) + b_hd            # fused [bb1|rx] heads

    # ---- cross entropy on masked column ranges of the fused logits --------
    ids = jax.lax.broadcasted_iota(jnp.int32, logits.shape, 1)       # (B, F)
    neg_big = f32(-1e30)   # exp(-1e30 - m) underflows to exactly 0

    def ce_mean(tgt_col, lo, hi):
        valid = (ids >= lo) & (ids < hi)
        l = jnp.where(valid, logits, neg_big)
        m = jnp.max(l, axis=-1, keepdims=True)
        lse = m + jnp.log(jnp.sum(jnp.exp(l - m), axis=-1, keepdims=True))
        onehot = (ids == (tgt_col + lo)).astype(f32)
        tgt_logit = jnp.sum(l * onehot, axis=-1, keepdims=True)
        return jnp.sum(lse - tgt_logit) * inv_b

    bb_t = tgt_ref[:, 0:1]
    rx_t = tgt_ref[:, 1:2]
    # Out-of-range targets would silently give tgt_logit=0 (torch CE errors).
    pl.debug_check(jnp.all((bb_t >= 0) & (bb_t < v_bb)),
                   "bb1 target out of range")
    pl.debug_check(jnp.all((rx_t >= 0) & (rx_t < v_rx)),
                   "reaction target out of range")

    out_ref[0] = ce_mean(bb_t, 0, v_bb) + ce_mean(rx_t, v_bb, v_bb + v_rx)


# --------------------------------------------------------------------------
# One-time parameter packing (run per parameter update, NOT per loss call).
# --------------------------------------------------------------------------
def pack_params(params, *, use_bf16_matmul=False):
    """Pack weights into one (sum_K, F) slab (rows padded to 8/16, lanes to
    128) plus an (8, F) f32 bias/BN vector block."""
    (w_zh, b_zh, w1, b1, g1, be1, w2, b2, g2, be2,
     w_bb, b_bb, w_rx, b_rx) = params
    L, H = w_zh.shape
    H2 = w1.shape[1]
    v_bb, v_rx = w_bb.shape[1], w_rx.shape[1]
    V = v_bb + v_rx

    F = _round_up(max(H, H2, V, 128), 128)
    k_align = 16 if use_bf16_matmul else 8    # keep bf16 sublane tiles aligned
    Kz = _round_up(L, k_align)
    K1 = _round_up(H, k_align)
    K2 = _round_up(H2, k_align)
    Kh = _round_up(H, k_align)
    w_dtype = jnp.bfloat16 if use_bf16_matmul else jnp.float32

    def padw(w, k):
        w = jnp.asarray(w, jnp.float32)
        return jnp.pad(w, ((0, k - w.shape[0]), (0, F - w.shape[1])))

    def padv(v):
        v = jnp.asarray(v, jnp.float32).reshape(1, -1)
        return jnp.pad(v, ((0, 0), (0, F - v.shape[1])))

    # Fuse the two output heads along the output (lane) dimension.
    w_hd = jnp.concatenate([jnp.asarray(w_bb, jnp.float32),
                            jnp.asarray(w_rx, jnp.float32)], axis=1)
    b_hd = jnp.concatenate([jnp.asarray(b_bb, jnp.float32).reshape(1, -1),
                            jnp.asarray(b_rx, jnp.float32).reshape(1, -1)],
                           axis=1)

    w_slab = jnp.concatenate(
        [padw(w_zh, Kz), padw(w1, K1), padw(w2, K2), padw(w_hd, Kh)],
        axis=0).astype(w_dtype)                                  # (sum_K, F)
    vec_block = jnp.concatenate(
        [padv(b_zh), padv(b1), padv(g1), padv(be1),
         padv(b2), padv(g2), padv(be2), padv(b_hd)], axis=0)     # (8, F) f32

    meta = dict(F=F, Kz=Kz, K1=K1, K2=K2, Kh=Kh, v_bb=v_bb, v_rx=v_rx,
                latent_dim=L, use_bf16=use_bf16_matmul)
    return w_slab, vec_block, meta


# --------------------------------------------------------------------------
# Per-call path: cached-jit wrapper around one pallas_call.
# --------------------------------------------------------------------------
@functools.partial(jax.jit, static_argnames=(
    "F", "Kz", "K1", "K2", "Kh", "v_bb", "v_rx", "use_bf16"))
def _category_decoder_loss_impl(w_slab, vec_block, dec_input_features, z,
                                *, F, Kz, K1, K2, Kh, v_bb, v_rx, use_bf16):
    B = z.shape[0]
    z_pad = jnp.pad(z.astype(jnp.float32), ((0, 0), (0, Kz - z.shape[1])))
    tgt = dec_input_features[:, :2].astype(jnp.int32)

    kernel = functools.partial(
        category_decoder_kernel, B=B, F=F, Kz=Kz, K1=K1, K2=K2, Kh=Kh,
        v_bb=v_bb, v_rx=v_rx, use_bf16=use_bf16)

    # Advisory cost estimate (4 matmuls with real K + BN/CE elementwise).
    flops = int(2 * B * F * (Kz + K1 + K2 + Kh) + 40 * B * F)
    transcendentals = int(2 * B * F + 4 * F + 2 * B)
    itemsize = 2 if use_bf16 else 4
    bytes_accessed = int(w_slab.size * itemsize + vec_block.size * 4
                         + z_pad.size * 4 + tgt.size * 4 + 4)

    out = pl.pallas_call(
        kernel,
        out_shape=jax.ShapeDtypeStruct((1,), jnp.float32),
        in_specs=[pl.BlockSpec(memory_space=pltpu.MemorySpace.VMEM)] * 4,
        out_specs=pl.BlockSpec(memory_space=pltpu.MemorySpace.SMEM),
        cost_estimate=pl.CostEstimate(flops=flops,
                                      transcendentals=transcendentals,
                                      bytes_accessed=bytes_accessed),
    )(w_slab, vec_block, z_pad, tgt)
    return out[0]


class CategoryDecoderLoss:
    """Packs parameters once; call as loss(dec_input_features, z)."""

    def __init__(self, params, *, use_bf16_matmul=False):
        # NOTE: keep use_bf16_matmul=False on v5e (no bf16 VPU; pure loss).
        self.w_slab, self.vec_block, self.meta = pack_params(
            params, use_bf16_matmul=use_bf16_matmul)

    def __call__(self, dec_input_features, z):
        m = self.meta
        return _category_decoder_loss_impl(
            self.w_slab, self.vec_block, dec_input_features, z,
            F=m["F"], Kz=m["Kz"], K1=m["K1"], K2=m["K2"], Kh=m["Kh"],
            v_bb=m["v_bb"], v_rx=m["v_rx"], use_bf16=m["use_bf16"])


# --------------------------------------------------------------------------
# Synthetic params + pure-JAX reference (for the sanity check)
# --------------------------------------------------------------------------
def init_params(key, bb1_vocab_dim, reaction_vocab_dim, dec_hidden_dim,
                latent_dim):
    """Deterministic synthetic params. Weights stored as (in_dim, out_dim)."""
    H = dec_hidden_dim
    ks = jax.random.split(key, 6)

    def lin(k, din, dout):
        w = (jax.random.normal(k, (din, dout), jnp.float32)
             * (1.0 / jnp.sqrt(jnp.float32(din))))
        b = jnp.zeros((1, dout), jnp.float32)
        return w, b

    w_zh, b_zh = lin(ks[0], latent_dim, H)
    w1, b1 = lin(ks[1], H, 2 * H)
    g1, be1 = jnp.ones((1, 2 * H), jnp.float32), jnp.zeros((1, 2 * H), jnp.float32)
    w2, b2 = lin(ks[2], 2 * H, H)
    g2, be2 = jnp.ones((1, H), jnp.float32), jnp.zeros((1, H), jnp.float32)
    w_bb, b_bb = lin(ks[3], H, bb1_vocab_dim)
    w_rx, b_rx = lin(ks[4], H, reaction_vocab_dim)

    return (w_zh, b_zh, w1, b1, g1, be1, w2, b2, g2, be2,
            w_bb, b_bb, w_rx, b_rx)


def _batchnorm_train_ref(x, gamma, beta):
    mean = jnp.mean(x, axis=0, keepdims=True)
    var = jnp.mean((x - mean) ** 2, axis=0, keepdims=True)
    return (x - mean) * jax.lax.rsqrt(var + BN_EPS) * gamma + beta


def reference_loss(dec_input_features, z, params):
    """Pure-JAX reference of the same forward for a sanity check."""
    (w_zh, b_zh, w1, b1, g1, be1, w2, b2, g2, be2,
     w_bb, b_bb, w_rx, b_rx) = params
    h = z @ w_zh + b_zh
    x = _batchnorm_train_ref(_leaky_relu(h @ w1 + b1), g1, be1)
    y = _batchnorm_train_ref(_leaky_relu(x @ w2 + b2), g2, be2)
    bb = y @ w_bb + b_bb
    rx = y @ w_rx + b_rx

    def ce(logits, tgt):
        lse = jax.scipy.special.logsumexp(logits, axis=-1)
        tgt_logit = jnp.take_along_axis(logits, tgt[:, None], axis=-1)[:, 0]
        return jnp.mean(lse - tgt_logit)

    return ce(bb, dec_input_features[:, 0]) + ce(rx, dec_input_features[:, 1])


if __name__ == "__main__":
    # Small synthetic config consistent with the module's __init__ signature.
    B = 8
    bb1_vocab_dim = 24
    reaction_vocab_dim = 12
    emb_dim = 16          # unused by forward (kept for signature parity)
    dec_hidden_dim = 32
    latent_dim = 16
    cdec_dropout = 0.0    # dropout is identity -> exact semantics

    key = jax.random.PRNGKey(0)
    k_p, k_z, k_t0, k_t1 = jax.random.split(key, 4)

    params = init_params(k_p, bb1_vocab_dim, reaction_vocab_dim,
                         dec_hidden_dim, latent_dim)

    z = jax.random.normal(k_z, (B, latent_dim), jnp.float32)
    bb1_target = jax.random.randint(k_t0, (B,), 0, bb1_vocab_dim, jnp.int32)
    reaction_target = jax.random.randint(k_t1, (B,), 0, reaction_vocab_dim,
                                         jnp.int32)
    dec_input_features = jnp.stack([bb1_target, reaction_target], axis=1)

    # f32 path: parameters packed once, loss callable reused per batch.
    loss_fn = CategoryDecoderLoss(params)             # pack once (per update)
    loss = loss_fn(dec_input_features, z)
    jax.block_until_ready(loss)

    ref = reference_loss(dec_input_features, z, params)
    assert jnp.allclose(loss, ref, rtol=1e-4, atol=1e-4), (loss, ref)

    # Second call reuses the cached compilation (no re-packing / re-tracing).
    loss2 = loss_fn(dec_input_features, z)
    jax.block_until_ready(loss2)
    assert jnp.allclose(loss2, ref, rtol=1e-4, atol=1e-4), (loss2, ref)

    # bf16 MXU-operand path (v6e/v7x throughput mode); weights packed bf16 at
    # pack time, BN/CE math stays f32.
    loss_fn_bf16 = CategoryDecoderLoss(params, use_bf16_matmul=True)
    loss_bf16 = loss_fn_bf16(dec_input_features, z)
    jax.block_until_ready(loss_bf16)
    assert jnp.isfinite(loss_bf16), loss_bf16
    assert jnp.abs(loss_bf16 - ref) < 0.5, (loss_bf16, ref)

    print("KERNEL_OK")
</pallas_src>

<mosaic_0001>
module attributes {stable_mosaic.version = 11 : i64} {
  func.func @category_decoder_kernel(%arg0: memref<144x128xf32, #tpu.memory_space<vmem>>, %arg1: memref<8x128xf32, #tpu.memory_space<vmem>>, %arg2: memref<8x16xf32, #tpu.memory_space<vmem>>, %arg3: memref<8x2xi32, #tpu.memory_space<vmem>>, %arg4: memref<1xf32, #tpu.memory_space<smem>>) attributes {dimension_semantics = [], scalar_prefetch = 0 : i64, scratch_operands = 0 : i64, tpu.core_type = #tpu.core_type<tc>} {
    %c0 = arith.constant 0 : index
    %c0_0 = arith.constant 0 : index
    %0 = vector.load %arg1[%c0, %c0_0] : memref<8x128xf32, #tpu.memory_space<vmem>>, vector<8x128xf32>
    %1 = vector.extract_strided_slice %0 {offsets = [0, 0], sizes = [1, 128], strides = [1, 1]} : vector<8x128xf32> to vector<1x128xf32>
    %2 = vector.extract_strided_slice %0 {offsets = [1, 0], sizes = [1, 128], strides = [1, 1]} : vector<8x128xf32> to vector<1x128xf32>
    %3 = vector.extract_strided_slice %0 {offsets = [2, 0], sizes = [1, 128], strides = [1, 1]} : vector<8x128xf32> to vector<1x128xf32>
    %4 = vector.extract_strided_slice %0 {offsets = [3, 0], sizes = [1, 128], strides = [1, 1]} : vector<8x128xf32> to vector<1x128xf32>
    %5 = vector.extract_strided_slice %0 {offsets = [4, 0], sizes = [1, 128], strides = [1, 1]} : vector<8x128xf32> to vector<1x128xf32>
    %6 = vector.extract_strided_slice %0 {offsets = [5, 0], sizes = [1, 128], strides = [1, 1]} : vector<8x128xf32> to vector<1x128xf32>
    %7 = vector.extract_strided_slice %0 {offsets = [6, 0], sizes = [1, 128], strides = [1, 1]} : vector<8x128xf32> to vector<1x128xf32>
    %8 = vector.extract_strided_slice %0 {offsets = [7, 0], sizes = [1, 128], strides = [1, 1]} : vector<8x128xf32> to vector<1x128xf32>
    %c0_1 = arith.constant 0 : index
    %c0_2 = arith.constant 0 : index
    %9 = vector.load %arg2[%c0_1, %c0_2] : memref<8x16xf32, #tpu.memory_space<vmem>>, vector<8x16xf32>
    %c0_3 = arith.constant 0 : index
    %c0_4 = arith.constant 0 : index
    %10 = vector.load %arg0[%c0_3, %c0_4] : memref<144x128xf32, #tpu.memory_space<vmem>>, vector<16x128xf32>
    %cst = arith.constant dense<0.000000e+00> : vector<8x128xf32>
    %11 = tpu.matmul %9, %10, %cst {dimension_numbers = #tpu.dot_dimension_numbers<[1], [0], [0], [1], [0, 0, 1, 1], [], []>} : vector<8x16xf32>, vector<16x128xf32>, vector<8x128xf32> -> vector<8x128xf32>
    %12 = vector.broadcast %1 : vector<1x128xf32> to vector<8x128xf32>
    %13 = arith.addf %11, %12 : vector<8x128xf32>
    %14 = vector.extract_strided_slice %13 {offsets = [0, 0], sizes = [8, 32], strides = [1, 1]} : vector<8x128xf32> to vector<8x32xf32>
    %c16 = arith.constant 16 : index
    %c0_5 = arith.constant 0 : index
    %15 = vector.load %arg0[%c16, %c0_5] : memref<144x128xf32, #tpu.memory_space<vmem>>, vector<32x128xf32>
    %cst_6 = arith.constant dense<0.000000e+00> : vector<8x128xf32>
    %16 = tpu.matmul %14, %15, %cst_6 {dimension_numbers = #tpu.dot_dimension_numbers<[1], [0], [0], [1], [0, 0, 1, 1], [], []>} : vector<8x32xf32>, vector<32x128xf32>, vector<8x128xf32> -> vector<8x128xf32>
    %17 = vector.broadcast %2 : vector<1x128xf32> to vector<8x128xf32>
    %18 = arith.addf %16, %17 : vector<8x128xf32>
    %cst_7 = arith.constant 0.000000e+00 : f32
    %19 = vector.broadcast %cst_7 : f32 to vector<8x128xf32>
    %20 = arith.cmpf oge, %18, %19 : vector<8x128xf32>
    %cst_8 = arith.constant 0.00999999977 : f32
    %21 = vector.broadcast %cst_8 : f32 to vector<8x128xf32>
    %22 = arith.mulf %21, %18 : vector<8x128xf32>
    %23 = arith.select %20, %18, %22 : vector<8x128xi1>, vector<8x128xf32>
    %cst_9 = arith.constant dense<0.000000e+00> : vector<128xf32>
    %24 = vector.multi_reduction <add>, %23, %cst_9 [0] : vector<8x128xf32> to vector<128xf32>
    %25 = vector.shape_cast %24 : vector<128xf32> to vector<1x128xf32>
    %cst_10 = arith.constant 1.250000e-01 : f32
    %26 = vector.broadcast %cst_10 : f32 to vector<1x128xf32>
    %27 = arith.mulf %25, %26 : vector<1x128xf32>
    %28 = vector.broadcast %27 : vector<1x128xf32> to vector<8x128xf32>
    %29 = arith.subf %23, %28 : vector<8x128xf32>
    %30 = arith.mulf %29, %29 : vector<8x128xf32>
    %cst_11 = arith.constant dense<0.000000e+00> : vector<128xf32>
    %31 = vector.multi_reduction <add>, %30, %cst_11 [0] : vector<8x128xf32> to vector<128xf32>
    %32 = vector.shape_cast %31 : vector<128xf32> to vector<1x128xf32>
    %cst_12 = arith.constant 1.250000e-01 : f32
    %33 = vector.broadcast %cst_12 : f32 to vector<1x128xf32>
    %34 = arith.mulf %32, %33 : vector<1x128xf32>
    %cst_13 = arith.constant 9.99999974E-6 : f32
    %35 = vector.broadcast %cst_13 : f32 to vector<1x128xf32>
    %36 = arith.addf %34, %35 : vector<1x128xf32>
    %37 = math.rsqrt %36 : vector<1x128xf32>
    %38 = vector.broadcast %37 : vector<1x128xf32> to vector<8x128xf32>
    %39 = arith.mulf %29, %38 : vector<8x128xf32>
    %40 = vector.broadcast %3 : vector<1x128xf32> to vector<8x128xf32>
    %41 = arith.mulf %39, %40 : vector<8x128xf32>
    %42 = vector.broadcast %4 : vector<1x128xf32> to vector<8x128xf32>
    %43 = arith.addf %41, %42 : vector<8x128xf32>
    %44 = vector.extract_strided_slice %43 {offsets = [0, 0], sizes = [8, 64], strides = [1, 1]} : vector<8x128xf32> to vector<8x64xf32>
    %c48 = arith.constant 48 : index
    %c0_14 = arith.constant 0 : index
    %45 = vector.load %arg0[%c48, %c0_14] : memref<144x128xf32, #tpu.memory_space<vmem>>, vector<64x128xf32>
    %cst_15 = arith.constant dense<0.000000e+00> : vector<8x128xf32>
    %46 = tpu.matmul %44, %45, %cst_15 {dimension_numbers = #tpu.dot_dimension_numbers<[1], [0], [0], [1], [0, 0, 1, 1], [], []>} : vector<8x64xf32>, vector<64x128xf32>, vector<8x128xf32> -> vector<8x128xf32>
    %47 = vector.broadcast %5 : vector<1x128xf32> to vector<8x128xf32>
    %48 = arith.addf %46, %47 : vector<8x128xf32>
    %cst_16 = arith.constant 0.000000e+00 : f32
    %49 = vector.broadcast %cst_16 : f32 to vector<8x128xf32>
    %50 = arith.cmpf oge, %48, %49 : vector<8x128xf32>
    %cst_17 = arith.constant 0.00999999977 : f32
    %51 = vector.broadcast %cst_17 : f32 to vector<8x128xf32>
    %52 = arith.mulf %51, %48 : vector<8x128xf32>
    %53 = arith.select %50, %48, %52 : vector<8x128xi1>, vector<8x128xf32>
    %cst_18 = arith.constant dense<0.000000e+00> : vector<128xf32>
    %54 = vector.multi_reduction <add>, %53, %cst_18 [0] : vector<8x128xf32> to vector<128xf32>
    %55 = vector.shape_cast %54 : vector<128xf32> to vector<1x128xf32>
    %cst_19 = arith.constant 1.250000e-01 : f32
    %56 = vector.broadcast %cst_19 : f32 to vector<1x128xf32>
    %57 = arith.mulf %55, %56 : vector<1x128xf32>
    %58 = vector.broadcast %57 : vector<1x128xf32> to vector<8x128xf32>
    %59 = arith.subf %53, %58 : vector<8x128xf32>
    %60 = arith.mulf %59, %59 : vector<8x128xf32>
    %cst_20 = arith.constant dense<0.000000e+00> : vector<128xf32>
    %61 = vector.multi_reduction <add>, %60, %cst_20 [0] : vector<8x128xf32> to vector<128xf32>
    %62 = vector.shape_cast %61 : vector<128xf32> to vector<1x128xf32>
    %cst_21 = arith.constant 1.250000e-01 : f32
    %63 = vector.broadcast %cst_21 : f32 to vector<1x128xf32>
    %64 = arith.mulf %62, %63 : vector<1x128xf32>
    %cst_22 = arith.constant 9.99999974E-6 : f32
    %65 = vector.broadcast %cst_22 : f32 to vector<1x128xf32>
    %66 = arith.addf %64, %65 : vector<1x128xf32>
    %67 = math.rsqrt %66 : vector<1x128xf32>
    %68 = vector.broadcast %67 : vector<1x128xf32> to vector<8x128xf32>
    %69 = arith.mulf %59, %68 : vector<8x128xf32>
    %70 = vector.broadcast %6 : vector<1x128xf32> to vector<8x128xf32>
    %71 = arith.mulf %69, %70 : vector<8x128xf32>
    %72 = vector.broadcast %7 : vector<1x128xf32> to vector<8x128xf32>
    %73 = arith.addf %71, %72 : vector<8x128xf32>
    %74 = vector.extract_strided_slice %73 {offsets = [0, 0], sizes = [8, 32], strides = [1, 1]} : vector<8x128xf32> to vector<8x32xf32>
    %c112 = arith.constant 112 : index
    %c0_23 = arith.constant 0 : index
    %75 = vector.load %arg0[%c112, %c0_23] : memref<144x128xf32, #tpu.memory_space<vmem>>, vector<32x128xf32>
    %cst_24 = arith.constant dense<0.000000e+00> : vector<8x128xf32>
    %76 = tpu.matmul %74, %75, %cst_24 {dimension_numbers = #tpu.dot_dimension_numbers<[1], [0], [0], [1], [0, 0, 1, 1], [], []>} : vector<8x32xf32>, vector<32x128xf32>, vector<8x128xf32> -> vector<8x128xf32>
    %77 = vector.broadcast %8 : vector<1x128xf32> to vector<8x128xf32>
    %78 = arith.addf %76, %77 : vector<8x128xf32>
    %79 = tpu.iota {dimensions = array<i32: 1>} : vector<8x128xi32>
    %c0_25 = arith.constant 0 : index
    %c0_26 = arith.constant 0 : index
    %80 = vector.load %arg3[%c0_25, %c0_26] : memref<8x2xi32, #tpu.memory_space<vmem>>, vector<8x1xi32>
    %c0_27 = arith.constant 0 : index
    %c1 = arith.constant 1 : index
    %81 = vector.load %arg3[%c0_27, %c1] : memref<8x2xi32, #tpu.memory_space<vmem>>, vector<8x1xi32>
    %c0_i32 = arith.constant 0 : i32
    %82 = vector.broadcast %c0_i32 : i32 to vector<8x1xi32>
    %83 = arith.cmpi sge, %80, %82 : vector<8x1xi32>
    %c24_i32 = arith.constant 24 : i32
    %84 = vector.broadcast %c24_i32 : i32 to vector<8x1xi32>
    %85 = arith.cmpi slt, %80, %84 : vector<8x1xi32>
    %86 = arith.andi %83, %85 : vector<8x1xi1>
    %cst_28 = arith.constant 1.000000e+00 : f32
    %cst_29 = arith.constant 0.000000e+00 : f32
    %87 = vector.broadcast %cst_28 : f32 to vector<8x1xf32>
    %88 = vector.broadcast %cst_29 : f32 to vector<8x1xf32>
    %89 = arith.select %86, %87, %88 : vector<8x1xi1>, vector<8x1xf32>
    %90 = vector.shape_cast %89 : vector<8x1xf32> to vector<1x8x1xf32>
    %cst_30 = arith.constant dense<0x7F800000> : vector<1xf32>
    %91 = vector.multi_reduction <minimumf>, %90, %cst_30 [1, 2] : vector<1x8x1xf32> to vector<1xf32>
    %92 = vector.shape_cast %91 : vector<1xf32> to vector<1x1x1xf32>
    %93 = vector.extract %92[0, 0, 0] : f32 from vector<1x1x1xf32>
    %cst_31 = arith.constant 0.000000e+00 : f32
    %94 = arith.cmpf ogt, %93, %cst_31 : f32
    %true = arith.constant true
    %95 = arith.xori %94, %true : i1
    %false = arith.constant false
    %96 = arith.ori %false, %95 : i1
    %false_32 = arith.constant false
    %c1_i32 = arith.constant 1 : i32
    %c-1_i32 = arith.constant -1 : i32
    %97 = arith.select %false_32, %c-1_i32, %c1_i32 : i32
    %c0_i32_33 = arith.constant 0 : i32
    %98 = vector.broadcast %c0_i32_33 : i32 to vector<8x1xi32>
    %99 = arith.cmpi sge, %81, %98 : vector<8x1xi32>
    %c12_i32 = arith.constant 12 : i32
    %100 = vector.broadcast %c12_i32 : i32 to vector<8x1xi32>
    %101 = arith.cmpi slt, %81, %100 : vector<8x1xi32>
    %102 = arith.andi %99, %101 : vector<8x1xi1>
    %cst_34 = arith.constant 1.000000e+00 : f32
    %cst_35 = arith.constant 0.000000e+00 : f32
    %103 = vector.broadcast %cst_34 : f32 to vector<8x1xf32>
    %104 = vector.broadcast %cst_35 : f32 to vector<8x1xf32>
    %105 = arith.select %102, %103, %104 : vector<8x1xi1>, vector<8x1xf32>
    %106 = vector.shape_cast %105 : vector<8x1xf32> to vector<1x8x1xf32>
    %cst_36 = arith.constant dense<0x7F800000> : vector<1xf32>
    %107 = vector.multi_reduction <minimumf>, %106, %cst_36 [1, 2] : vector<1x8x1xf32> to vector<1xf32>
    %108 = vector.shape_cast %107 : vector<1xf32> to vector<1x1x1xf32>
    %109 = vector.extract %108[0, 0, 0] : f32 from vector<1x1x1xf32>
    %cst_37 = arith.constant 0.000000e+00 : f32
    %110 = arith.cmpf ogt, %109, %cst_37 : f32
    %true_38 = arith.constant true
    %111 = arith.xori %110, %true_38 : i1
    %false_39 = arith.constant false
    %112 = arith.ori %false_39, %111 : i1
    %false_40 = arith.constant false
    %c2_i32 = arith.constant 2 : i32
    %c-1_i32_41 = arith.constant -1 : i32
    %113 = arith.select %false_40, %c-1_i32_41, %c2_i32 : i32
    %c0_i32_42 = arith.constant 0 : i32
    %114 = vector.broadcast %c0_i32_42 : i32 to vector<8x128xi32>
    %115 = arith.cmpi sge, %79, %114 : vector<8x128xi32>
    %c24_i32_43 = arith.constant 24 : i32
    %116 = vector.broadcast %c24_i32_43 : i32 to vector<8x128xi32>
    %117 = arith.cmpi slt, %79, %116 : vector<8x128xi32>
    %118 = arith.andi %115, %117 : vector<8x128xi1>
    %cst_44 = arith.constant -1.000000e+30 : f32
    %119 = vector.broadcast %cst_44 : f32 to vector<8x128xf32>
    %120 = arith.select %118, %78, %119 : vector<8x128xi1>, vector<8x128xf32>
    %cst_45 = arith.constant dense<0xFF800000> : vector<8xf32>
    %121 = vector.multi_reduction <maximumf>, %120, %cst_45 [1] : vector<8x128xf32> to vector<8xf32>
    %122 = vector.shape_cast %121 : vector<8xf32> to vector<8x1xf32>
    %123 = vector.broadcast %122 : vector<8x1xf32> to vector<8x128xf32>
    %124 = arith.subf %120, %123 : vector<8x128xf32>
    %125 = math.exp %124 : vector<8x128xf32>
    %cst_46 = arith.constant dense<0.000000e+00> : vector<8xf32>
    %126 = vector.multi_reduction <add>, %125, %cst_46 [1] : vector<8x128xf32> to vector<8xf32>
    %127 = vector.shape_cast %126 : vector<8xf32> to vector<8x1xf32>
    %128 = math.log %127 : vector<8x1xf32>
    %129 = arith.addf %122, %128 : vector<8x1xf32>
    %c0_i32_47 = arith.constant 0 : i32
    %130 = vector.broadcast %c0_i32_47 : i32 to vector<8x1xi32>
    %131 = arith.addi %80, %130 : vector<8x1xi32>
    %132 = vector.broadcast %131 : vector<8x1xi32> to vector<8x128xi32>
    %133 = arith.cmpi eq, %79, %132 : vector<8x128xi32>
    %134 = arith.extui %133 : vector<8x128xi1> to vector<8x128xi32>
    %135 = arith.sitofp %134 : vector<8x128xi32> to vector<8x128xf32>
    %136 = arith.mulf %120, %135 : vector<8x128xf32>
    %cst_48 = arith.constant dense<0.000000e+00> : vector<8xf32>
    %137 = vector.multi_reduction <add>, %136, %cst_48 [1] : vector<8x128xf32> to vector<8xf32>
    %138 = vector.shape_cast %137 : vector<8xf32> to vector<8x1xf32>
    %139 = arith.subf %129, %138 : vector<8x1xf32>
    %140 = vector.shape_cast %139 : vector<8x1xf32> to vector<1x8x1xf32>
    %cst_49 = arith.constant dense<0.000000e+00> : vector<1xf32>
    %141 = vector.multi_reduction <add>, %140, %cst_49 [1, 2] : vector<1x8x1xf32> to vector<1xf32>
    %142 = vector.shape_cast %141 : vector<1xf32> to vector<1x1x1xf32>
    %143 = vector.extract %142[0, 0, 0] : f32 from vector<1x1x1xf32>
    %cst_50 = arith.constant 1.250000e-01 : f32
    %144 = arith.mulf %143, %cst_50 : f32
    %c24_i32_51 = arith.constant 24 : i32
    %145 = vector.broadcast %c24_i32_51 : i32 to vector<8x128xi32>
    %146 = arith.cmpi sge, %79, %145 : vector<8x128xi32>
    %c36_i32 = arith.constant 36 : i32
    %147 = vector.broadcast %c36_i32 : i32 to vector<8x128xi32>
    %148 = arith.cmpi slt, %79, %147 : vector<8x128xi32>
    %149 = arith.andi %146, %148 : vector<8x128xi1>
    %cst_52 = arith.constant -1.000000e+30 : f32
    %150 = vector.broadcast %cst_52 : f32 to vector<8x128xf32>
    %151 = arith.select %149, %78, %150 : vector<8x128xi1>, vector<8x128xf32>
    %cst_53 = arith.constant dense<0xFF800000> : vector<8xf32>
    %152 = vector.multi_reduction <maximumf>, %151, %cst_53 [1] : vector<8x128xf32> to vector<8xf32>
    %153 = vector.shape_cast %152 : vector<8xf32> to vector<8x1xf32>
    %154 = vector.broadcast %153 : vector<8x1xf32> to vector<8x128xf32>
    %155 = arith.subf %151, %154 : vector<8x128xf32>
    %156 = math.exp %155 : vector<8x128xf32>
    %cst_54 = arith.constant dense<0.000000e+00> : vector<8xf32>
    %157 = vector.multi_reduction <add>, %156, %cst_54 [1] : vector<8x128xf32> to vector<8xf32>
    %158 = vector.shape_cast %157 : vector<8xf32> to vector<8x1xf32>
    %159 = math.log %158 : vector<8x1xf32>
    %160 = arith.addf %153, %159 : vector<8x1xf32>
    %c24_i32_55 = arith.constant 24 : i32
    %161 = vector.broadcast %c24_i32_55 : i32 to vector<8x1xi32>
    %162 = arith.addi %81, %161 : vector<8x1xi32>
    %163 = vector.broadcast %162 : vector<8x1xi32> to vector<8x128xi32>
    %164 = arith.cmpi eq, %79, %163 : vector<8x128xi32>
    %165 = arith.extui %164 : vector<8x128xi1> to vector<8x128xi32>
    %166 = arith.sitofp %165 : vector<8x128xi32> to vector<8x128xf32>
    %167 = arith.mulf %151, %166 : vector<8x128xf32>
    %cst_56 = arith.constant dense<0.000000e+00> : vector<8xf32>
    %168 = vector.multi_reduction <add>, %167, %cst_56 [1] : vector<8x128xf32> to vector<8xf32>
    %169 = vector.shape_cast %168 : vector<8xf32> to vector<8x1xf32>
    %170 = arith.subf %160, %169 : vector<8x1xf32>
    %171 = vector.shape_cast %170 : vector<8x1xf32> to vector<1x8x1xf32>
    %cst_57 = arith.constant dense<0.000000e+00> : vector<1xf32>
    %172 = vector.multi_reduction <add>, %171, %cst_57 [1, 2] : vector<1x8x1xf32> to vector<1xf32>
    %173 = vector.shape_cast %172 : vector<1xf32> to vector<1x1x1xf32>
    %174 = vector.extract %173[0, 0, 0] : f32 from vector<1x1x1xf32>
    %cst_58 = arith.constant 1.250000e-01 : f32
    %175 = arith.mulf %174, %cst_58 : f32
    %176 = arith.addf %144, %175 : f32
    %c0_59 = arith.constant 0 : index
    %177 = memref.load %arg4[%c0_59] : memref<1xf32, #tpu.memory_space<smem>>
    memref.store %176, %arg4[%c0_59] : memref<1xf32, #tpu.memory_space<smem>>
    return
  }
}

</mosaic_0001>

<llo_original>
// kernel: _category_decoder_loss_impl.1
$region0: #{_category_decoder_loss_impl.1}
  #allocation0 [shape = 'u32[]', space=smem, size = 0x4, offset = 0x4, fixed_abs, tag = 'smem constant byte address 0x4 - core index']
  #allocation1 [shape = 'u32[144,128]{1,0:T(1,128)}', space=vmem, size = 0x12000, scoped, tag = 'internal scratch']
  %s0 = inlined_call_operand.hbm [shape: f32[144,128], index: 0, kind: input, shape index: {}]
  %s1 = inlined_call_operand.vmem [shape: f32[8,128], index: 1, kind: input, shape index: {}]
  %s2 = inlined_call_operand.hbm [shape: f32[8,16], index: 2, kind: input, shape index: {}]
  %s3 = inlined_call_operand.vmem [shape: s32[8,2], index: 3, kind: input, shape index: {}]
  %s4 = inlined_call_operand.hbm [shape: f32[1], index: 4, kind: output, shape index: {}]
  %s5 = sld [smem:[#allocation0]]
  $region34: #{_category_decoder_loss_impl.1} parent=0
    _
  %s7 = ssub.s32 1, %s5
  %s8 = scalar_select 0, %s7, %s5
  $region1: #{_category_decoder_loss_impl.1} parent=0
    #allocation2 [shape = 'u8[73728]{0}', space=vmem, size = 0x12000, scoped, tag = 'input window, operand 0, single buffered']
    #allocation3 [shape = 's32[1]{0}', space=sflag, size = 0x4, scoped, tag = 'scoped memory for _category_decoder_loss_impl.1']
    #allocation4 [shape = 's32[1]{0}', space=sflag, size = 0x4, scoped, tag = 'scoped memory for _category_decoder_loss_impl.1']
    #allocation5 [shape = 'u8[4096]{0}', space=vmem, size = 0x1000, scoped, tag = 'input window, operand 2, single buffered']
    #allocation6 [shape = 's32[1]{0}', space=sflag, size = 0x4, scoped, tag = 'scoped memory for _category_decoder_loss_impl.1']
    #allocation7 [shape = 'u8[512]{0}', space=smem, size = 0x200, scoped, tag = 'output window, operand 0, single buffered']
    %9 = vsyncpa [#allocation3], 0
    %10 = vsyncpa [#allocation6], 0
    %11 = vsyncpa [#allocation4], 0
    // Predicated region
    $region2: #{_category_decoder_loss_impl.1} parent=1 // pred_check
      _
    $region3: #{_category_decoder_loss_impl.1} parent=1 // pred_check_branch
      %13 = sbr.rel (0) target = $region5
    $region4: #{_category_decoder_loss_impl.1} parent=1 // pred_region
      %s15 = ssub.s32 2304, 2304
      %16 = vsyncadd [#allocation3], %s15
      %s17 = sshll.u32 [#allocation2], 4
      %s18 = int_to_ptr.vmem [resolvable:$true] %s17
      %23 = dma.hbm_to_vmem [thread:$0]  %s0, 2304, %s18, [#allocation3], 128, 128, 8
    $region5: #{_category_decoder_loss_impl.1} parent=1 // pred_fallthru
      _
    // Predicated region
    $region6: #{_category_decoder_loss_impl.1} parent=1 // pred_check
      _
    $region7: #{_category_decoder_loss_impl.1} parent=1 // pred_check_branch
      %25 = sbr.rel (0) target = $region9
    $region8: #{_category_decoder_loss_impl.1} parent=1 // pred_region
      _
    $region9: #{_category_decoder_loss_impl.1} parent=1 // pred_fallthru
      _
    // Predicated region
    $region10: #{_category_decoder_loss_impl.1} parent=1 // pred_check
      _
    $region11: #{_category_decoder_loss_impl.1} parent=1 // pred_check_branch
      %27 = sbr.rel (0) target = $region13
    $region12: #{_category_decoder_loss_impl.1} parent=1 // pred_region
      %s29 = ssub.s32 128, 128
      %30 = vsyncadd [#allocation6], %s29
      %s32 = sshll.u32 [#allocation5], 4
      %s33 = int_to_ptr.vmem [resolvable:$true] %s32
      %35 = dma.hbm_to_vmem [thread:$0]  %s2, 128, %s33, [#allocation6]
    $region13: #{_category_decoder_loss_impl.1} parent=1 // pred_fallthru
      _
    // Predicated region
    $region14: #{_category_decoder_loss_impl.1} parent=1 // pred_check
      _
    $region15: #{_category_decoder_loss_impl.1} parent=1 // pred_check_branch
      %37 = sbr.rel (0) target = $region17
    $region16: #{_category_decoder_loss_impl.1} parent=1 // pred_region
      _
    $region17: #{_category_decoder_loss_impl.1} parent=1 // pred_fallthru
      _
    // Predicated region
    $region18: #{_category_decoder_loss_impl.1} parent=1 // pred_check
      _
    $region19: #{_category_decoder_loss_impl.1} parent=1 // pred_check_branch
      %39 = sbr.rel (0) target = $region21
    $region20: #{_category_decoder_loss_impl.1} parent=1 // pred_region
      %40 = dma.done [#allocation3], 2304
    $region21: #{_category_decoder_loss_impl.1} parent=1 // pred_fallthru
      _
    // Predicated region
    $region22: #{_category_decoder_loss_impl.1} parent=1 // pred_check
      _
    $region23: #{_category_decoder_loss_impl.1} parent=1 // pred_check_branch
      %42 = sbr.rel (0) target = $region25
    $region24: #{_category_decoder_loss_impl.1} parent=1 // pred_region
      %43 = dma.done [#allocation6], 128
    $region25: #{_category_decoder_loss_impl.1} parent=1 // pred_fallthru
      _
    %v44 = vld [vmem:[%s1] sm:$0xff]
    %v45 = vld [vmem:[#allocation5] sm:$0xff]
    %v46 = vld [vmem:[#allocation2] sm:$0xff]
    %v47 = vld [vmem:[#allocation2 + $0x8] sm:$0xff]
    %v48 = vlaneseq
    %v49 = vshrl.u32 %v48, 7
    %v50 = vsub.s32 0, %v49
    %v51 = vrot.slane %v44, %v50
    %vm52 = vcmask 130048
    %v54 = vsel %vm52, %v45, 0
    %56 = vmatprep.subr.mxu0 0.0
    %57 = vmatpush1.msra.mxu0 0.0
    %58 = vmatprep.subr.mxu0 0.0
    %59 = vmatpush1.msra.mxu0 0.0
    %60 = vmatprep.subr.mxu0 0.0
    %61 = vmatpush1.msra.mxu0 0.0
    %62 = vmatprep.subr.mxu0 0.0
    %63 = vmatpush1.msra.mxu0 0.0
    %64 = vmatprep.subr.mxu0 0.0
    %65 = vmatpush1.msra.mxu0 0.0
    %66 = vmatprep.subr.mxu0 0.0
    %67 = vmatpush1.msra.mxu0 0.0
    %68 = vmatprep.subr.mxu0 0.0
    %69 = vmatpush1.msra.mxu0 0.0
    %70 = vmatprep.subr.mxu0 0.0
    %71 = vmatpush1.msra.mxu0 0.0
    %72 = vmatprep.subr.mxu0 0.0
    %73 = vmatpush1.msra.mxu0 0.0
    %74 = vmatprep.subr.mxu0 0.0
    %75 = vmatpush1.msra.mxu0 0.0
    %76 = vmatprep.subr.mxu0 0.0
    %77 = vmatpush1.msra.mxu0 0.0
    %78 = vmatprep.subr.mxu0 0.0
    %79 = vmatpush1.msra.mxu0 0.0
    %80 = vmatprep.subr.mxu0 0.0
    %81 = vmatpush1.msra.mxu0 0.0
    %82 = vmatprep.subr.mxu0 0.0
    %83 = vmatpush1.msra.mxu0 0.0
    %84 = vmatprep.subr.mxu0 0.0
    %85 = vmatpush1.msra.mxu0 %v47
    %86 = vmatprep.subr.mxu0 0.0
    %87 = vmatpush1.msra.mxu0 %v46
    %88 = vmatprep.subr.mxu0 0.0
    %89 = vmatpush2.msra.mxu0 0.0
    %90 = vmatprep.subr.mxu0 0.0
    %91 = vmatpush2.msra.mxu0 0.0
    %92 = vmatprep.subr.mxu0 0.0
    %93 = vmatpush2.msra.mxu0 0.0
    %94 = vmatprep.subr.mxu0 0.0
    %95 = vmatpush2.msra.mxu0 0.0
    %96 = vmatprep.subr.mxu0 0.0
    %97 = vmatpush2.msra.mxu0 0.0
    %98 = vmatprep.subr.mxu0 0.0
    %99 = vmatpush2.msra.mxu0 0.0
    %100 = vmatprep.subr.mxu0 0.0
    %101 = vmatpush2.msra.mxu0 0.0
    %102 = vmatprep.subr.mxu0 0.0
    %103 = vmatpush2.msra.mxu0 0.0
    %104 = vmatprep.subr.mxu0 0.0
    %105 = vmatpush2.msra.mxu0 0.0
    %106 = vmatprep.subr.mxu0 0.0
    %107 = vmatpush2.msra.mxu0 0.0
    %108 = vmatprep.subr.mxu0 0.0
    %109 = vmatpush2.msra.mxu0 0.0
    %110 = vmatprep.subr.mxu0 0.0
    %111 = vmatpush2.msra.mxu0 0.0
    %112 = vmatprep.subr.mxu0 0.0
    %113 = vmatpush2.msra.mxu0 0.0
    %114 = vmatprep.subr.mxu0 0.0
    %115 = vmatpush2.msra.mxu0 0.0
    %116 = vmatprep.subr.mxu0 0.0
    %117 = vmatpush2.msra.mxu0 0.0
    %118 = vmatprep.subr.mxu0 0.0
    %119 = vmatpush2.msra.mxu0 0.0
    %120 = vmatprep.mubr.f32.mxu0 0.0
    %121 = vmatmul.mubr.f32.gmra.mxu0 %v54
    %v122 = vpop.f32.mrf.mxu0
    %v123 = vadd.f32 %v51, %v122
    %v124 = vpop.f32.mrf.mxu0
    %125 = vdwg.mxu0
    %v126 = vld [vmem:[#allocation2 + $0x10] sm:$0xff]
    %v127 = vld [vmem:[#allocation2 + $0x18] sm:$0xff]
    %v128 = vld [vmem:[#allocation2 + $0x20] sm:$0xff]
    %v129 = vld [vmem:[#allocation2 + $0x28] sm:$0xff]
    %v130 = vlaneseq
    %v131 = vshrl.u32 %v130, 7
    %v132 = vsub.s32 1, %v131
    %v133 = vrot.slane %v44, %v132
    %vm134 = vcmask 261120
    %v136 = vsel %vm134, %v123, 0
    %138 = vmatprep.subr.mxu0 0.0
    %139 = vmatpush1.msra.mxu0 0.0
    %140 = vmatprep.subr.mxu0 0.0
    %141 = vmatpush1.msra.mxu0 0.0
    %142 = vmatprep.subr.mxu0 0.0
    %143 = vmatpush1.msra.mxu0 0.0
    %144 = vmatprep.subr.mxu0 0.0
    %145 = vmatpush1.msra.mxu0 0.0
    %146 = vmatprep.subr.mxu0 0.0
    %147 = vmatpush1.msra.mxu0 0.0
    %148 = vmatprep.subr.mxu0 0.0
    %149 = vmatpush1.msra.mxu0 0.0
    %150 = vmatprep.subr.mxu0 0.0
    %151 = vmatpush1.msra.mxu0 0.0
    %152 = vmatprep.subr.mxu0 0.0
    %153 = vmatpush1.msra.mxu0 0.0
    %154 = vmatprep.subr.mxu0 0.0
    %155 = vmatpush1.msra.mxu0 0.0
    %156 = vmatprep.subr.mxu0 0.0
    %157 = vmatpush1.msra.mxu0 0.0
    %158 = vmatprep.subr.mxu0 0.0
    %159 = vmatpush1.msra.mxu0 0.0
    %160 = vmatprep.subr.mxu0 0.0
    %161 = vmatpush1.msra.mxu0 0.0
    %162 = vmatprep.subr.mxu0 0.0
    %163 = vmatpush1.msra.mxu0 %v129
    %164 = vmatprep.subr.mxu0 0.0
    %165 = vmatpush1.msra.mxu0 %v128
    %166 = vmatprep.subr.mxu0 0.0
    %167 = vmatpush1.msra.mxu0 %v127
    %168 = vmatprep.subr.mxu0 0.0
    %169 = vmatpush1.msra.mxu0 %v126
    %170 = vmatprep.subr.mxu0 0.0
    %171 = vmatpush2.msra.mxu0 0.0
    %172 = vmatprep.subr.mxu0 0.0
    %173 = vmatpush2.msra.mxu0 0.0
    %174 = vmatprep.subr.mxu0 0.0
    %175 = vmatpush2.msra.mxu0 0.0
    %176 = vmatprep.subr.mxu0 0.0
    %177 = vmatpush2.msra.mxu0 0.0
    %178 = vmatprep.subr.mxu0 0.0
    %179 = vmatpush2.msra.mxu0 0.0
    %180 = vmatprep.subr.mxu0 0.0
    %181 = vmatpush2.msra.mxu0 0.0
    %182 = vmatprep.subr.mxu0 0.0
    %183 = vmatpush2.msra.mxu0 0.0
    %184 = vmatprep.subr.mxu0 0.0
    %185 = vmatpush2.msra.mxu0 0.0
    %186 = vmatprep.subr.mxu0 0.0
    %187 = vmatpush2.msra.mxu0 0.0
    %188 = vmatprep.subr.mxu0 0.0
    %189 = vmatpush2.msra.mxu0 0.0
    %190 = vmatprep.subr.mxu0 0.0
    %191 = vmatpush2.msra.mxu0 0.0
    %192 = vmatprep.subr.mxu0 0.0
    %193 = vmatpush2.msra.mxu0 0.0
    %194 = vmatprep.subr.mxu0 0.0
    %195 = vmatpush2.msra.mxu0 0.0
    %196 = vmatprep.subr.mxu0 0.0
    %197 = vmatpush2.msra.mxu0 0.0
    %198 = vmatprep.subr.mxu0 0.0
    %199 = vmatpush2.msra.mxu0 0.0
    %200 = vmatprep.subr.mxu0 0.0
    %201 = vmatpush2.msra.mxu0 0.0
    %202 = vmatprep.mubr.f32.mxu0 0.0
    %203 = vmatmul.mubr.f32.gmra.mxu0 %v136
    %v204 = vpop.f32.mrf.mxu0
    %v205 = vadd.f32 %v133, %v204
    %v206 = vpop.f32.mrf.mxu0
    %207 = vdwg.mxu0
    %vm208 = vcmp.ge.f32.partialorder %v205, 0.0
    %v209 = vmul.f32 %v205, 0.01
    %v210 = vsel %vm208, %v205, %v209
    %v211 = vrot.slane %v210, 4
    %v212 = vadd.f32 %v210, %v211
    %v213 = vrot.slane %v212, 2
    %v214 = vadd.f32 %v212, %v213
    %v215 = vrot.slane %v214, 1
    %v216 = vadd.f32 %v214, %v215
    %v217 = vmul.f32 %v216, 0.125
    %v218 = vsub.f32 %v210, %v217
    %v219 = vmul.f32 %v218, %v218
    %v220 = vrot.slane %v219, 4
    %v221 = vadd.f32 %v219, %v220
    %v222 = vrot.slane %v221, 2
    %v223 = vadd.f32 %v221, %v222
    %v224 = vrot.slane %v223, 1
    %v225 = vadd.f32 %v223, %v224
    %v226 = vmul.f32 %v225, 0.125
    %v227 = vadd.f32 %v226, 1e-05
    %v228 = vrsqrt.pop %v227
    %v229 = vmul.f32 %v218, %v228
    %v230 = vlaneseq
    %v231 = vshrl.u32 %v230, 7
    %v232 = vsub.s32 2, %v231
    %v233 = vrot.slane %v44, %v232
    %v234 = vmul.f32 %v229, %v233
    %v235 = vlaneseq
    %v236 = vshrl.u32 %v235, 7
    %v237 = vsub.s32 3, %v236
    %v238 = vrot.slane %v44, %v237
    %v239 = vadd.f32 %v234, %v238
    %v240 = vld [vmem:[#allocation2 + $0x30] sm:$0xff]
    %v241 = vld [vmem:[#allocation2 + $0x38] sm:$0xff]
    %v242 = vld [vmem:[#allocation2 + $0x40] sm:$0xff]
    %v243 = vld [vmem:[#allocation2 + $0x48] sm:$0xff]
    %v244 = vld [vmem:[#allocation2 + $0x50] sm:$0xff]
    %v245 = vld [vmem:[#allocation2 + $0x58] sm:$0xff]
    %v246 = vld [vmem:[#allocation2 + $0x60] sm:$0xff]
    %v247 = vld [vmem:[#allocation2 + $0x68] sm:$0xff]
    %v248 = vlaneseq
    %v249 = vshrl.u32 %v248, 7
    %v250 = vsub.s32 4, %v249
    %v251 = vrot.slane %v44, %v250
    %vm252 = vcmask 523264
    %v254 = vsel %vm252, %v239, 0
    %256 = vmatprep.subr.mxu0 0.0
    %257 = vmatpush1.msra.mxu0 0.0
    %258 = vmatprep.subr.mxu0 0.0
    %259 = vmatpush1.msra.mxu0 0.0
    %260 = vmatprep.subr.mxu0 0.0
    %261 = vmatpush1.msra.mxu0 0.0
    %262 = vmatprep.subr.mxu0 0.0
    %263 = vmatpush1.msra.mxu0 0.0
    %264 = vmatprep.subr.mxu0 0.0
    %265 = vmatpush1.msra.mxu0 0.0
    %266 = vmatprep.subr.mxu0 0.0
    %267 = vmatpush1.msra.mxu0 0.0
    %268 = vmatprep.subr.mxu0 0.0
    %269 = vmatpush1.msra.mxu0 0.0
    %270 = vmatprep.subr.mxu0 0.0
    %271 = vmatpush1.msra.mxu0 0.0
    %272 = vmatprep.subr.mxu0 0.0
    %273 = vmatpush1.msra.mxu0 %v247
    %274 = vmatprep.subr.mxu0 0.0
    %275 = vmatpush1.msra.mxu0 %v246
    %276 = vmatprep.subr.mxu0 0.0
    %277 = vmatpush1.msra.mxu0 %v245
    %278 = vmatprep.subr.mxu0 0.0
    %279 = vmatpush1.msra.mxu0 %v244
    %280 = vmatprep.subr.mxu0 0.0
    %281 = vmatpush1.msra.mxu0 %v243
    %282 = vmatprep.subr.mxu0 0.0
    %283 = vmatpush1.msra.mxu0 %v242
    %284 = vmatprep.subr.mxu0 0.0
    %285 = vmatpush1.msra.mxu0 %v241
    %286 = vmatprep.subr.mxu0 0.0
    %287 = vmatpush1.msra.mxu0 %v240
    %288 = vmatprep.subr.mxu0 0.0
    %289 = vmatpush2.msra.mxu0 0.0
    %290 = vmatprep.subr.mxu0 0.0
    %291 = vmatpush2.msra.mxu0 0.0
    %292 = vmatprep.subr.mxu0 0.0
    %293 = vmatpush2.msra.mxu0 0.0
    %294 = vmatprep.subr.mxu0 0.0
    %295 = vmatpush2.msra.mxu0 0.0
    %296 = vmatprep.subr.mxu0 0.0
    %297 = vmatpush2.msra.mxu0 0.0
    %298 = vmatprep.subr.mxu0 0.0
    %299 = vmatpush2.msra.mxu0 0.0
    %300 = vmatprep.subr.mxu0 0.0
    %301 = vmatpush2.msra.mxu0 0.0
    %302 = vmatprep.subr.mxu0 0.0
    %303 = vmatpush2.msra.mxu0 0.0
    %304 = vmatprep.subr.mxu0 0.0
    %305 = vmatpush2.msra.mxu0 0.0
    %306 = vmatprep.subr.mxu0 0.0
    %307 = vmatpush2.msra.mxu0 0.0
    %308 = vmatprep.subr.mxu0 0.0
    %309 = vmatpush2.msra.mxu0 0.0
    %310 = vmatprep.subr.mxu0 0.0
    %311 = vmatpush2.msra.mxu0 0.0
    %312 = vmatprep.subr.mxu0 0.0
    %313 = vmatpush2.msra.mxu0 0.0
    %314 = vmatprep.subr.mxu0 0.0
    %315 = vmatpush2.msra.mxu0 0.0
    %316 = vmatprep.subr.mxu0 0.0
    %317 = vmatpush2.msra.mxu0 0.0
    %318 = vmatprep.subr.mxu0 0.0
    %319 = vmatpush2.msra.mxu0 0.0
    %320 = vmatprep.mubr.f32.mxu0 0.0
    %321 = vmatmul.mubr.f32.gmra.mxu0 %v254
    %v322 = vpop.f32.mrf.mxu0
    %v323 = vadd.f32 %v251, %v322
    %v324 = vpop.f32.mrf.mxu0
    %325 = vdwg.mxu0
    %vm326 = vcmp.ge.f32.partialorder %v323, 0.0
    %v327 = vmul.f32 %v323, 0.01
    %v328 = vsel %vm326, %v323, %v327
    %v329 = vrot.slane %v328, 4
    %v330 = vadd.f32 %v328, %v329
    %v331 = vrot.slane %v330, 2
    %v332 = vadd.f32 %v330, %v331
    %v333 = vrot.slane %v332, 1
    %v334 = vadd.f32 %v332, %v333
    %v335 = vmul.f32 %v334, 0.125
    %v336 = vsub.f32 %v328, %v335
    %v337 = vmul.f32 %v336, %v336
    %v338 = vrot.slane %v337, 4
    %v339 = vadd.f32 %v337, %v338
    %v340 = vrot.slane %v339, 2
    %v341 = vadd.f32 %v339, %v340
    %v342 = vrot.slane %v341, 1
    %v343 = vadd.f32 %v341, %v342
    %v344 = vmul.f32 %v343, 0.125
    %v345 = vadd.f32 %v344, 1e-05
    %v346 = vrsqrt.pop %v345
    %v347 = vmul.f32 %v336, %v346
    %v348 = vlaneseq
    %v349 = vshrl.u32 %v348, 7
    %v350 = vsub.s32 5, %v349
    %v351 = vrot.slane %v44, %v350
    %v352 = vmul.f32 %v347, %v351
    %v353 = vlaneseq
    %v354 = vshrl.u32 %v353, 7
    %v355 = vsub.s32 6, %v354
    %v356 = vrot.slane %v44, %v355
    %v357 = vadd.f32 %v352, %v356
    %v358 = vld [vmem:[#allocation2 + $0x70] sm:$0xff]
    %v359 = vld [vmem:[#allocation2 + $0x78] sm:$0xff]
    %v360 = vld [vmem:[#allocation2 + $0x80] sm:$0xff]
    %v361 = vld [vmem:[#allocation2 + $0x88] sm:$0xff]
    %v362 = vlaneseq
    %v363 = vshrl.u32 %v362, 7
    %v364 = vsub.s32 7, %v363
    %v365 = vrot.slane %v44, %v364
    %v367 = vsel %vm134, %v357, 0
    %369 = vmatprep.subr.mxu0 0.0
    %370 = vmatpush1.msra.mxu0 0.0
    %371 = vmatprep.subr.mxu0 0.0
    %372 = vmatpush1.msra.mxu0 0.0
    %373 = vmatprep.subr.mxu0 0.0
    %374 = vmatpush1.msra.mxu0 0.0
    %375 = vmatprep.subr.mxu0 0.0
    %376 = vmatpush1.msra.mxu0 0.0
    %377 = vmatprep.subr.mxu0 0.0
    %378 = vmatpush1.msra.mxu0 0.0
    %379 = vmatprep.subr.mxu0 0.0
    %380 = vmatpush1.msra.mxu0 0.0
    %381 = vmatprep.subr.mxu0 0.0
    %382 = vmatpush1.msra.mxu0 0.0
    %383 = vmatprep.subr.mxu0 0.0
    %384 = vmatpush1.msra.mxu0 0.0
    %385 = vmatprep.subr.mxu0 0.0
    %386 = vmatpush1.msra.mxu0 0.0
    %387 = vmatprep.subr.mxu0 0.0
    %388 = vmatpush1.msra.mxu0 0.0
    %389 = vmatprep.subr.mxu0 0.0
    %390 = vmatpush1.msra.mxu0 0.0
    %391 = vmatprep.subr.mxu0 0.0
    %392 = vmatpush1.msra.mxu0 0.0
    %393 = vmatprep.subr.mxu0 0.0
    %394 = vmatpush1.msra.mxu0 %v361
    %395 = vmatprep.subr.mxu0 0.0
    %396 = vmatpush1.msra.mxu0 %v360
    %397 = vmatprep.subr.mxu0 0.0
    %398 = vmatpush1.msra.mxu0 %v359
    %399 = vmatprep.subr.mxu0 0.0
    %400 = vmatpush1.msra.mxu0 %v358
    %401 = vmatprep.subr.mxu0 0.0
    %402 = vmatpush2.msra.mxu0 0.0
    %403 = vmatprep.subr.mxu0 0.0
    %404 = vmatpush2.msra.mxu0 0.0
    %405 = vmatprep.subr.mxu0 0.0
    %406 = vmatpush2.msra.mxu0 0.0
    %407 = vmatprep.subr.mxu0 0.0
    %408 = vmatpush2.msra.mxu0 0.0
    %409 = vmatprep.subr.mxu0 0.0
    %410 = vmatpush2.msra.mxu0 0.0
    %411 = vmatprep.subr.mxu0 0.0
    %412 = vmatpush2.msra.mxu0 0.0
    %413 = vmatprep.subr.mxu0 0.0
    %414 = vmatpush2.msra.mxu0 0.0
    %415 = vmatprep.subr.mxu0 0.0
    %416 = vmatpush2.msra.mxu0 0.0
    %417 = vmatprep.subr.mxu0 0.0
    %418 = vmatpush2.msra.mxu0 0.0
    %419 = vmatprep.subr.mxu0 0.0
    %420 = vmatpush2.msra.mxu0 0.0
    %421 = vmatprep.subr.mxu0 0.0
    %422 = vmatpush2.msra.mxu0 0.0
    %423 = vmatprep.subr.mxu0 0.0
    %424 = vmatpush2.msra.mxu0 0.0
    %425 = vmatprep.subr.mxu0 0.0
    %426 = vmatpush2.msra.mxu0 0.0
    %427 = vmatprep.subr.mxu0 0.0
    %428 = vmatpush2.msra.mxu0 0.0
    %429 = vmatprep.subr.mxu0 0.0
    %430 = vmatpush2.msra.mxu0 0.0
    %431 = vmatprep.subr.mxu0 0.0
    %432 = vmatpush2.msra.mxu0 0.0
    %433 = vmatprep.mubr.f32.mxu0 0.0
    %434 = vmatmul.mubr.f32.gmra.mxu0 %v367
    %v435 = vpop.f32.mrf.mxu0
    %v436 = vadd.f32 %v365, %v435
    %v437 = vpop.f32.mrf.mxu0
    %438 = vdwg.mxu0
    %v439 = vlaneseq
    %v440 = vand.u32 %v439, 127
    %v441 = vld [vmem:[%s3] sm:$0xff]
    %vm442 = vcmp.ge.s32.totalorder %v440, 0
    %vm443 = vcmp.lt.s32.totalorder %v440, 24
    %vm444 = vmand %vm442, %vm443
    %v445 = vsel %vm444, %v436, -1e+30
    %446 = vmax.xlane.f32.xlu0 %v445
    %v447 = vpop.xlane.xlu0 %446
    %v448 = vsub.f32 %v445, %v447
    %v449 = vmul.f32 %v448, 1.442695
    %v450 = vpow.pop %v449
    %451 = vadd.xlane.f32.xlu0 %v450
    %v452 = vpop.xlane.xlu0 %451
    %v453 = vlog2.pop %v452
    %v454 = vmul.f32 %v453, 0.6931472
    %v455 = vadd.f32 %v447, %v454
    %456 = vset.pattern.permute.xlu0 0
    %457 = vperm.xlu0 %456, %v441
    %v458 = vpop.permute.xlu0 %457
    %vm459 = vcmp.eq.s32.totalorder %v440, %v458
    %v460 = vsel %vm459, 1, 0
    %v461 = vcvt.s32.f32 %v460
    %v462 = vmul.f32 %v445, %v461
    %463 = vadd.xlane.f32.xlu0 %v462
    %v464 = vpop.xlane.xlu0 %463
    %v465 = vsub.f32 %v455, %v464
    %vm466 = vcmask 7168
    %v467 = vsel %vm466, %v465, 0.0
    %468 = vadd.xlane.f32.xlu0 %v467
    %v469 = vpop.xlane.xlu0 %468
    %v470 = vrot.slane %v469, 4
    %v471 = vadd.f32 %v469, %v470
    %v472 = vrot.slane %v471, 2
    %v473 = vadd.f32 %v471, %v472
    %v474 = vrot.slane %v473, 1
    %v475 = vadd.f32 %v473, %v474
    %s476 = vtos %v475
    %s477 = smul.f32 %s476, 0.125
    %vm478 = vcmp.ge.s32.totalorder %v440, 24
    %vm479 = vcmp.lt.s32.totalorder %v440, 36
    %vm480 = vmand %vm478, %vm479
    %v481 = vsel %vm480, %v436, -1e+30
    %482 = vmax.xlane.f32.xlu0 %v481
    %v483 = vpop.xlane.xlu0 %482
    %v484 = vsub.f32 %v481, %v483
    %v485 = vmul.f32 %v484, 1.442695
    %v486 = vpow.pop %v485
    %487 = vadd.xlane.f32.xlu0 %v486
    %v488 = vpop.xlane.xlu0 %487
    %v489 = vlog2.pop %v488
    %v490 = vmul.f32 %v489, 0.6931472
    %v491 = vadd.f32 %v483, %v490
    %v492 = vadd.s32 %v441, 24
    %493 = vset.pattern.permute.xlu0 1
    %494 = vperm.xlu0 %493, %v492
    %v495 = vpop.permute.xlu0 %494
    %vm496 = vcmp.eq.s32.totalorder %v440, %v495
    %v497 = vsel %vm496, 1, 0
    %v498 = vcvt.s32.f32 %v497
    %v499 = vmul.f32 %v481, %v498
    %500 = vadd.xlane.f32.xlu0 %v499
    %v501 = vpop.xlane.xlu0 %500
    %v502 = vsub.f32 %v491, %v501
    %v503 = vsel %vm466, %v502, 0.0
    %504 = vadd.xlane.f32.xlu0 %v503
    %v505 = vpop.xlane.xlu0 %504
    %v506 = vrot.slane %v505, 4
    %v507 = vadd.f32 %v505, %v506
    %v508 = vrot.slane %v507, 2
    %v509 = vadd.f32 %v507, %v508
    %v510 = vrot.slane %v509, 1
    %v511 = vadd.f32 %v509, %v510
    %s512 = vtos %v511
    %s513 = smul.f32 %s512, 0.125
    %s514 = sadd.f32 %s477, %s513
    %s515 = scalar_lea.smem [#allocation7], 0
    %516 = sst [smem:[%s515]] %s514
    // Predicated region
    $region26: #{_category_decoder_loss_impl.1} parent=1 // pred_check
      _
    $region27: #{_category_decoder_loss_impl.1} parent=1 // pred_check_branch
      %518 = sbr.rel (0) target = $region29
    $region28: #{_category_decoder_loss_impl.1} parent=1 // pred_region
      %s520 = ssub.s32 16, 16
      %521 = vsyncadd [#allocation4], %s520
      %524 = dma.smem_to_hbm [#allocation7], 16, %s4, [#allocation4]
    $region29: #{_category_decoder_loss_impl.1} parent=1 // pred_fallthru
      _
    // Predicated region
    $region30: #{_category_decoder_loss_impl.1} parent=1 // pred_check
      _
    $region31: #{_category_decoder_loss_impl.1} parent=1 // pred_check_branch
      %526 = sbr.rel (0) target = $region33
    $region32: #{_category_decoder_loss_impl.1} parent=1 // pred_region
      %527 = dma.done [#allocation4], 16
    $region33: #{_category_decoder_loss_impl.1} parent=1 // pred_fallthru
      _
    %528 = sfence
    %529 = vsyncpa [#allocation3], 1
    %530 = vsyncpa [#allocation6], 1
    %531 = vsyncpa [#allocation4], 1

</llo_original>
